<compile_context>
chip_gen: v6e
topology: v6e:2x2x1
jax: 0.10.0
libtpu: 0.0.40
codegen_flags: <defaults>
</compile_context>

<pallas_src>
import jax
import jax.numpy as jnp
from jax.experimental import pallas as pl
from jax.experimental.pallas import tpu as pltpu

_LANE = 128   # TPU vreg lane width; fused output dim padded to a multiple of this.
_SUBLANE = 8  # TPU vreg sublane count; batch dim padded to a multiple of this.


def _round_up(x, m):
    return ((x + m - 1) // m) * m


def actor_fused_kernel(y_ref, wt_ref, b_ref, out_ref):
    """One fused linear layer: out = y @ Wt + b (Wt already transposed & padded).

    y:   [Bpad, K]      activations (sublane-padded)
    wt:  [K, Npad]      both heads' weights, pre-transposed, lane-padded
    b:   [1, Npad]      both heads' biases, lane-padded
    out: [Bpad, Npad]   lane-dense output slab
    """
    acc = jnp.dot(y_ref[...], wt_ref[...], preferred_element_type=jnp.float32)
    out_ref[...] = (acc + b_ref[...]).astype(out_ref.dtype)


@jax.jit
def actor_forward(y_star, w1, b1, w2, b2):
    """Pallas implementation of Actor.forward. Returns (x_1, x_2)."""
    B, K = y_star.shape
    A = w1.shape[0]                      # action_s
    N = 2 * A                            # fused output width (mu head || log-std head)
    n_pad = _round_up(max(N, _LANE), _LANE)
    b_pad = _round_up(max(B, _SUBLANE), _SUBLANE)

    # --- host-side layout plumbing (fuse heads, pre-transpose, pad) ----------
    # [2A, K] -> [K, 2A]: contraction dim on sublanes, output dim on lanes.
    wt = jnp.concatenate([w1, w2], axis=0).T.astype(jnp.float32)       # [K, 2A]
    wt = jnp.pad(wt, ((0, 0), (0, n_pad - N)))                         # [K, n_pad]
    bias = jnp.concatenate([b1, b2], axis=0).reshape(1, N).astype(jnp.float32)
    bias = jnp.pad(bias, ((0, 0), (0, n_pad - N)))                     # [1, n_pad]
    y = jnp.pad(y_star.astype(jnp.float32), ((0, b_pad - B), (0, 0)))  # [b_pad, K]

    vmem = pl.BlockSpec(memory_space=pltpu.MemorySpace.VMEM)
    out = pl.pallas_call(
        actor_fused_kernel,
        out_shape=jax.ShapeDtypeStruct((b_pad, n_pad), jnp.float32),
        in_specs=[vmem, vmem, vmem],
        out_specs=vmem,
    )(y, wt, bias)

    # Split the fused, padded slab back into the two heads (drop batch padding).
    x1 = out[:B, :A]
    x2 = out[:B, A:N]
    return x1, x2


def init_actor_params(key, input_s, action_s):
    """Deterministic synthetic init matching small_weight_init / std_weight_init."""
    k1, k2, k3, k4 = jax.random.split(key, 4)
    # l1: N(mean=0, std=0.1)
    w1 = 0.0 + 0.1 * jax.random.normal(k1, (action_s, input_s), jnp.float32)
    b1 = 0.0 + 0.1 * jax.random.normal(k2, (action_s,), jnp.float32)
    # l2: N(mean=-1, std=0.1)  (log-std head)
    w2 = -1.0 + 0.1 * jax.random.normal(k3, (action_s, input_s), jnp.float32)
    b2 = -1.0 + 0.1 * jax.random.normal(k4, (action_s,), jnp.float32)
    return w1, b1, w2, b2


if __name__ == "__main__":
    # Small shapes consistent with the module (Linear input_s -> action_s).
    B, input_s, action_s = 8, 4, 4

    key = jax.random.PRNGKey(0)
    k_params, k_input = jax.random.split(key)
    w1, b1, w2, b2 = init_actor_params(k_params, input_s, action_s)
    y_star = jax.random.normal(k_input, (B, input_s), jnp.float32)

    x1, x2 = actor_forward(y_star, w1, b1, w2, b2)
    jax.block_until_ready((x1, x2))

    # Sanity-check against plain-JAX reference of nn.Linear semantics.
    x1_ref = y_star @ w1.T + b1
    x2_ref = y_star @ w2.T + b2
    assert x1.shape == (B, action_s) and x2.shape == (B, action_s)
    assert jnp.allclose(x1, x1_ref, atol=1e-5), "x1 mismatch"
    assert jnp.allclose(x2, x2_ref, atol=1e-5), "x2 mismatch"

    print("KERNEL_OK")
</pallas_src>

<mosaic_0001>
module attributes {stable_mosaic.version = 11 : i64} {
  func.func @actor_fused_kernel(%arg0: memref<8x4xf32, #tpu.memory_space<vmem>>, %arg1: memref<4x128xf32, #tpu.memory_space<vmem>>, %arg2: memref<1x128xf32, #tpu.memory_space<vmem>>, %arg3: memref<8x128xf32, #tpu.memory_space<vmem>>) attributes {dimension_semantics = [], scalar_prefetch = 0 : i64, scratch_operands = 0 : i64, tpu.core_type = #tpu.core_type<tc>} {
    %c0 = arith.constant 0 : index
    %c0_0 = arith.constant 0 : index
    %0 = vector.load %arg0[%c0, %c0_0] : memref<8x4xf32, #tpu.memory_space<vmem>>, vector<8x4xf32>
    %c0_1 = arith.constant 0 : index
    %c0_2 = arith.constant 0 : index
    %1 = vector.load %arg1[%c0_1, %c0_2] : memref<4x128xf32, #tpu.memory_space<vmem>>, vector<4x128xf32>
    %cst = arith.constant dense<0.000000e+00> : vector<8x128xf32>
    %2 = tpu.matmul %0, %1, %cst {dimension_numbers = #tpu.dot_dimension_numbers<[1], [0], [0], [1], [0, 0, 1, 1], [], []>} : vector<8x4xf32>, vector<4x128xf32>, vector<8x128xf32> -> vector<8x128xf32>
    %c0_3 = arith.constant 0 : index
    %c0_4 = arith.constant 0 : index
    %3 = vector.load %arg2[%c0_3, %c0_4] : memref<1x128xf32, #tpu.memory_space<vmem>>, vector<1x128xf32>
    %4 = vector.broadcast %3 : vector<1x128xf32> to vector<8x128xf32>
    %5 = arith.addf %2, %4 : vector<8x128xf32>
    %c0_5 = arith.constant 0 : index
    %c0_6 = arith.constant 0 : index
    %6 = vector.load %arg3[%c0_5, %c0_6] : memref<8x128xf32, #tpu.memory_space<vmem>>, vector<8x128xf32>
    tpu.vector_store %arg3[%c0_5, %c0_6], %5 {strides = array<i32>} : memref<8x128xf32, #tpu.memory_space<vmem>>, vector<8x128xf32>,
    return
  }
}

</mosaic_0001>

<llo_original>
// kernel: actor_forward.1
$region0: #{actor_forward.1}
  #allocation0 [shape = 'u32[]', space=smem, size = 0x4, offset = 0x4, fixed_abs, tag = 'smem constant byte address 0x4 - core index']
  #allocation1 [shape = 'u32[144,128]{1,0:T(1,128)}', space=vmem, size = 0x12000, scoped, tag = 'internal scratch']
  %s0 = inlined_call_operand.vmem [shape: f32[8,4], index: 0, kind: input, shape index: {}]
  %s1 = inlined_call_operand.vmem [shape: f32[4,128], index: 1, kind: input, shape index: {}]
  %s2 = inlined_call_operand.vmem [shape: f32[1,128], index: 2, kind: input, shape index: {}]
  %s3 = inlined_call_operand.vmem [shape: f32[8,128], index: 3, kind: output, shape index: {}]
  %s4 = sld [smem:[#allocation0]]
  $region22: #{actor_forward.1} parent=0
    _
  %s6 = ssub.s32 1, %s4
  %s7 = scalar_select 0, %s6, %s4
  // Predicated region
  $region2: #{actor_forward.1} parent=0 // pred_check
    _
  $region3: #{actor_forward.1} parent=0 // pred_check_branch
    %9 = sbr.rel (0) target = $region5
  $region4: #{actor_forward.1} parent=0 // pred_region
    _
  $region5: #{actor_forward.1} parent=0 // pred_fallthru
    _
  // Predicated region
  $region6: #{actor_forward.1} parent=0 // pred_check
    _
  $region7: #{actor_forward.1} parent=0 // pred_check_branch
    %11 = sbr.rel (0) target = $region9
  $region8: #{actor_forward.1} parent=0 // pred_region
    _
  $region9: #{actor_forward.1} parent=0 // pred_fallthru
    _
  // Predicated region
  $region10: #{actor_forward.1} parent=0 // pred_check
    _
  $region11: #{actor_forward.1} parent=0 // pred_check_branch
    %13 = sbr.rel (0) target = $region13
  $region12: #{actor_forward.1} parent=0 // pred_region
    _
  $region13: #{actor_forward.1} parent=0 // pred_fallthru
    _
  %v14 = vld [vmem:[%s0] sm:$0xff]
  %v15 = vld [vmem:[%s1] sm:$0xf]
  %v16 = vld [vmem:[%s2] sm:$0x1]
  %v18 = vlaneseq
  %v19 = vshrl.u32 %v18, 7
  %v20 = vsub.s32 0, %v19
  %v21 = vrot.slane %v16, %v20
  %vm23 = vcmask 31744
  %v25 = vsel %vm23, %v14, 0
  %vm27 = vcmask 1043456
  %v29 = vsel %vm27, %v15, 0
  %31 = vmatprep.subr.mxu0 0.0
  %32 = vmatpush1.msra.mxu0 0.0
  %33 = vmatprep.subr.mxu0 0.0
  %34 = vmatpush1.msra.mxu0 0.0
  %35 = vmatprep.subr.mxu0 0.0
  %36 = vmatpush1.msra.mxu0 0.0
  %37 = vmatprep.subr.mxu0 0.0
  %38 = vmatpush1.msra.mxu0 0.0
  %39 = vmatprep.subr.mxu0 0.0
  %40 = vmatpush1.msra.mxu0 0.0
  %41 = vmatprep.subr.mxu0 0.0
  %42 = vmatpush1.msra.mxu0 0.0
  %43 = vmatprep.subr.mxu0 0.0
  %44 = vmatpush1.msra.mxu0 0.0
  %45 = vmatprep.subr.mxu0 0.0
  %46 = vmatpush1.msra.mxu0 0.0
  %47 = vmatprep.subr.mxu0 0.0
  %48 = vmatpush1.msra.mxu0 0.0
  %49 = vmatprep.subr.mxu0 0.0
  %50 = vmatpush1.msra.mxu0 0.0
  %51 = vmatprep.subr.mxu0 0.0
  %52 = vmatpush1.msra.mxu0 0.0
  %53 = vmatprep.subr.mxu0 0.0
  %54 = vmatpush1.msra.mxu0 0.0
  %55 = vmatprep.subr.mxu0 0.0
  %56 = vmatpush1.msra.mxu0 0.0
  %57 = vmatprep.subr.mxu0 0.0
  %58 = vmatpush1.msra.mxu0 0.0
  %59 = vmatprep.subr.mxu0 0.0
  %60 = vmatpush1.msra.mxu0 0.0
  %61 = vmatprep.subr.mxu0 0.0
  %62 = vmatpush1.msra.mxu0 %v29
  %63 = vmatprep.subr.mxu0 0.0
  %64 = vmatpush2.msra.mxu0 0.0
  %65 = vmatprep.subr.mxu0 0.0
  %66 = vmatpush2.msra.mxu0 0.0
  %67 = vmatprep.subr.mxu0 0.0
  %68 = vmatpush2.msra.mxu0 0.0
  %69 = vmatprep.subr.mxu0 0.0
  %70 = vmatpush2.msra.mxu0 0.0
  %71 = vmatprep.subr.mxu0 0.0
  %72 = vmatpush2.msra.mxu0 0.0
  %73 = vmatprep.subr.mxu0 0.0
  %74 = vmatpush2.msra.mxu0 0.0
  %75 = vmatprep.subr.mxu0 0.0
  %76 = vmatpush2.msra.mxu0 0.0
  %77 = vmatprep.subr.mxu0 0.0
  %78 = vmatpush2.msra.mxu0 0.0
  %79 = vmatprep.subr.mxu0 0.0
  %80 = vmatpush2.msra.mxu0 0.0
  %81 = vmatprep.subr.mxu0 0.0
  %82 = vmatpush2.msra.mxu0 0.0
  %83 = vmatprep.subr.mxu0 0.0
  %84 = vmatpush2.msra.mxu0 0.0
  %85 = vmatprep.subr.mxu0 0.0
  %86 = vmatpush2.msra.mxu0 0.0
  %87 = vmatprep.subr.mxu0 0.0
  %88 = vmatpush2.msra.mxu0 0.0
  %89 = vmatprep.subr.mxu0 0.0
  %90 = vmatpush2.msra.mxu0 0.0
  %91 = vmatprep.subr.mxu0 0.0
  %92 = vmatpush2.msra.mxu0 0.0
  %93 = vmatprep.subr.mxu0 0.0
  %94 = vmatpush2.msra.mxu0 0.0
  %95 = vmatprep.mubr.f32.mxu0 0.0
  %96 = vmatmul.mubr.f32.gmra.mxu0 %v25
  %v97 = vpop.f32.mrf.mxu0
  %v98 = vadd.f32 %v21, %v97
  %v99 = vpop.f32.mrf.mxu0
  %100 = vdwg.mxu0
  %101 = vst [vmem:[%s3] sm:$0xff] %v98
  // Predicated region
  $region14: #{actor_forward.1} parent=0 // pred_check
    _
  $region15: #{actor_forward.1} parent=0 // pred_check_branch
    %103 = sbr.rel (0) target = $region17
  $region16: #{actor_forward.1} parent=0 // pred_region
    _
  $region17: #{actor_forward.1} parent=0 // pred_fallthru
    _
  // Predicated region
  $region18: #{actor_forward.1} parent=0 // pred_check
    _
  $region19: #{actor_forward.1} parent=0 // pred_check_branch
    %105 = sbr.rel (0) target = $region21
  $region20: #{actor_forward.1} parent=0 // pred_region
    _
  $region21: #{actor_forward.1} parent=0 // pred_fallthru
    _

</llo_original>
